<compile_context>
chip_gen: v6e
topology: v6e:2x2x1
jax: 0.10.0
libtpu: 0.0.40
codegen_flags: <defaults>
</compile_context>

<pallas_src>
import math

import jax
import jax.numpy as jnp
from jax.experimental import pallas as pl
from jax.experimental.pallas import tpu as pltpu


# ----------------------------- kernel body ---------------------------------
def _pe_add_kernel(x_ref, pe_ref, o_ref):
    # x_ref: (bt, tl), pe_ref: (1, tl) -> broadcast add over the batch rows.
    o_ref[...] = x_ref[...] + pe_ref[...]


# ----------------------------- buffer init ---------------------------------
def make_positional_encoding(max_seq_length, d_model):
    """Sinusoidal buffer, exactly as the PyTorch module's __init__ builds it."""
    position = jnp.arange(max_seq_length, dtype=jnp.float32)[:, None]
    div_term = jnp.exp(jnp.arange(0, d_model, 2, dtype=jnp.float32)
                       * (-math.log(10000.0) / d_model))
    angles = position * div_term                       # (L, d_model // 2)
    pe = jnp.zeros((max_seq_length, d_model), jnp.float32)
    pe = pe.at[:, 0::2].set(jnp.sin(angles))
    pe = pe.at[:, 1::2].set(jnp.cos(angles))
    return pe                                          # float32, like register_buffer


# ----------------------------- tile planning --------------------------------
def _largest_div_mult(n, mult, cap):
    """Largest d <= cap with d % mult == 0 and n % d == 0, or None."""
    hi = min(n, cap) // mult
    for k in range(hi, 0, -1):
        d = k * mult
        if n % d == 0:
            return d
    return None


def _vmem_capacity_bytes():
    try:
        return int(pltpu.get_tpu_info().vmem_capacity_bytes)
    except Exception:
        return 64 << 20  # conservative: v7x per-TensorCore capacity


def _pick_tiles(B, L, itemsize):
    """Pick (batch_tile, lane_tile) for a (B, L) memory-bound add."""
    # Sublane packing multiple depends on element width.
    sub = 8 if itemsize >= 4 else (16 if itemsize == 2 else 32)

    vmem_cap = _vmem_capacity_bytes()
    # Pipelined footprint ~= 2*x_blk + 2*out_blk + 2*pe_slab  (6 buffers).
    # Keep the whole thing comfortably under half of VMEM; 1-4 MiB blocks
    # already hit the HBM roofline for a streaming add.
    block_budget = max(64 << 10, min(4 << 20, vmem_cap // 12))

    # Lane tile: multiple of 128 (unmasked lane-dense stores), bounded so that
    # a minimal sub-row block still fits the budget.
    if L <= 128:
        tl = L                                    # full-extent block: always legal
    else:
        lane_cap = max(128, (block_budget // (sub * itemsize)) // 128 * 128)
        tl = min(L - (L % 128) if L % 128 else L, lane_cap)
        d = _largest_div_mult(L, 128, tl)         # prefer exact divisor -> no masked edge
        if d is not None:
            tl = d

    # Batch tile: multiple of `sub` within the per-block budget.
    if B <= sub:
        bt = B                                    # full-extent block: always legal
    else:
        row_cap = max(sub, block_budget // (tl * itemsize))
        bt = min(B - (B % sub) if B % sub else B, (row_cap // sub) * sub)
        bt = max(bt, sub)
        d = _largest_div_mult(B, sub, bt)
        if d is not None:
            bt = d
    return bt, tl


# ----------------------------- wrapper --------------------------------------
def positional_encoding(x, pe, *, force_pallas=False, min_bytes=1 << 20):
    """x: (B, S, D);  pe: (max_seq_length, D) float32.  Returns x + pe[:S]."""
    B, S, D = x.shape
    out_dtype = jnp.promote_types(x.dtype, pe.dtype)   # mirror torch promotion
    itemsize = jnp.dtype(out_dtype).itemsize

    pe_slice = pe[:S].astype(out_dtype)

    # Tiny tensors: the pallas_call launch + per-step overhead dominates; let
    # XLA fuse the broadcast add instead (unless the kernel path is forced).
    if not force_pallas and B * S * D * itemsize < min_bytes:
        return x.astype(out_dtype) + pe_slice[None, :, :]

    # Flatten (S, D) into the lane axis: lane-dense, unmasked loads/stores.
    L = S * D
    x2 = x.astype(out_dtype).reshape(B, L)
    pe2 = pe_slice.reshape(1, L)

    bt, tl = _pick_tiles(B, L, itemsize)
    n_lane = pl.cdiv(L, tl)
    n_batch = pl.cdiv(B, bt)

    # Raise the scoped-VMEM limit enough for the double-buffered plan
    # (v5e default is only 16 MiB); stay well under v7x's 64 MiB physical.
    needed = 4 * bt * tl * itemsize + 2 * tl * itemsize + (2 << 20)
    vmem_limit = min(48 << 20, max(32 << 20, 2 * needed))

    out = pl.pallas_call(
        _pe_add_kernel,
        out_shape=jax.ShapeDtypeStruct((B, L), out_dtype),
        # Lane axis outermost so pe's block index only changes on the outer
        # axis -> the (1, tl) pe slab stays resident across all batch steps.
        grid=(n_lane, n_batch),
        in_specs=[
            pl.BlockSpec((bt, tl), lambda j, i: (i, j)),
            pl.BlockSpec((1, tl), lambda j, i: (0, j)),
        ],
        out_specs=pl.BlockSpec((bt, tl), lambda j, i: (i, j)),
        compiler_params=pltpu.CompilerParams(
            dimension_semantics=("parallel", "parallel"),
            vmem_limit_bytes=vmem_limit,
        ),
    )(x2, pe2)
    return out.reshape(B, S, D)


def positional_encoding_ref(x, pe):
    S = x.shape[1]
    return x.astype(jnp.promote_types(x.dtype, pe.dtype)) + pe[None, :S, :]


# ----------------------------- test ------------------------------------------
if __name__ == "__main__":
    B, S, D, MAX_LEN = 2, 8, 32, 64
    key = jax.random.PRNGKey(0)
    x = jax.random.normal(key, (B, S, D), jnp.float32)
    pe = make_positional_encoding(MAX_LEN, D)

    out = positional_encoding(x, pe, force_pallas=True)   # exercise the kernel
    out = jax.block_until_ready(out)

    ref = positional_encoding_ref(x, pe)
    assert out.shape == (B, S, D)
    max_err = float(jnp.max(jnp.abs(out - ref)))
    assert jnp.allclose(out, ref, atol=1e-6, rtol=1e-6), max_err
    print("KERNEL_OK")
</pallas_src>

<mosaic_0001>
module attributes {stable_mosaic.version = 11 : i64} {
  func.func @_pe_add_kernel(%arg0: i32, %arg1: i32, %arg2: memref<2x256xf32, #tpu.memory_space<vmem>>, %arg3: memref<1x256xf32, #tpu.memory_space<vmem>>, %arg4: memref<2x256xf32, #tpu.memory_space<vmem>>) attributes {dimension_semantics = [#tpu.dimension_semantics<parallel>, #tpu.dimension_semantics<parallel>], iteration_bounds = array<i64: 1, 1>, scalar_prefetch = 0 : i64, scratch_operands = 0 : i64, tpu.core_type = #tpu.core_type<tc>, window_params = [{transform_indices = @transform_0, window_bounds = array<i64: 2, 256>}, {transform_indices = @transform_1, window_bounds = array<i64: 1, 256>}, {transform_indices = @transform_2, window_bounds = array<i64: 2, 256>}]} {
    %c0 = arith.constant 0 : index
    %c0_0 = arith.constant 0 : index
    %0 = vector.load %arg2[%c0, %c0_0] : memref<2x256xf32, #tpu.memory_space<vmem>>, vector<2x256xf32>
    %c0_1 = arith.constant 0 : index
    %c0_2 = arith.constant 0 : index
    %1 = vector.load %arg3[%c0_1, %c0_2] : memref<1x256xf32, #tpu.memory_space<vmem>>, vector<1x256xf32>
    %2 = vector.broadcast %1 : vector<1x256xf32> to vector<2x256xf32>
    %3 = arith.addf %0, %2 : vector<2x256xf32>
    %c0_3 = arith.constant 0 : index
    %c0_4 = arith.constant 0 : index
    %4 = vector.load %arg4[%c0_3, %c0_4] : memref<2x256xf32, #tpu.memory_space<vmem>>, vector<2x256xf32>
    tpu.vector_store %arg4[%c0_3, %c0_4], %3 {strides = array<i32>} : memref<2x256xf32, #tpu.memory_space<vmem>>, vector<2x256xf32>,
    return
  }
  func.func @transform_0(%arg0: i32, %arg1: i32) -> (i32, i32) {
    %c0_i32 = arith.constant 0 : i32
    return %arg1, %arg0 : i32, i32
  }
  func.func @transform_1(%arg0: i32, %arg1: i32) -> (i32, i32) {
    %c0_i32 = arith.constant 0 : i32
    %c0_i32_0 = arith.constant 0 : i32
    return %c0_i32, %arg0 : i32, i32
  }
  func.func @transform_2(%arg0: i32, %arg1: i32) -> (i32, i32) {
    %c0_i32 = arith.constant 0 : i32
    return %arg1, %arg0 : i32, i32
  }
}

</mosaic_0001>

<llo_original>
// kernel: tpu_custom_call.1
$region0: #{tpu_custom_call.1}
  #allocation0 [shape = 'u32[]', space=smem, size = 0x4, offset = 0x4, fixed_abs, tag = 'smem constant byte address 0x4 - core index']
  #allocation1 [shape = 'u32[144,128]{1,0:T(1,128)}', space=vmem, size = 0x12000, scoped, tag = 'internal scratch']
  %s0 = inlined_call_operand.hbm [shape: f32[2,256], index: 0, kind: input, shape index: {}]
  %s1 = inlined_call_operand.hbm [shape: f32[1,256], index: 1, kind: input, shape index: {}]
  %s2 = inlined_call_operand.hbm [shape: f32[2,256], index: 2, kind: output, shape index: {}]
  %s3 = sld [smem:[#allocation0]]
  $region26: #{tpu_custom_call.1} parent=0
    _
  %s5 = ssub.s32 1, %s3
  %s6 = scalar_select 0, %s5, %s3
  $region1: #{tpu_custom_call.1} parent=0
    #allocation2 [shape = 'u8[2048]{0}', space=vmem, size = 0x800, scoped, tag = 'input window, operand 0, single buffered']
    #allocation3 [shape = 's32[1]{0}', space=sflag, size = 0x4, scoped, tag = 'scoped memory for tpu_custom_call.1']
    #allocation4 [shape = 's32[1]{0}', space=sflag, size = 0x4, scoped, tag = 'scoped memory for tpu_custom_call.1']
    #allocation5 [shape = 'u8[1024]{0}', space=vmem, size = 0x400, scoped, tag = 'input window, operand 1, single buffered']
    #allocation6 [shape = 's32[1]{0}', space=sflag, size = 0x4, scoped, tag = 'scoped memory for tpu_custom_call.1']
    #allocation7 [shape = 'u8[2048]{0}', space=vmem, size = 0x800, scoped, tag = 'output window, operand 0, single buffered']
    %7 = vsyncpa [#allocation3], 0
    %8 = vsyncpa [#allocation6], 0
    %9 = vsyncpa [#allocation4], 0
    // Predicated region
    $region2: #{tpu_custom_call.1} parent=1 // pred_check
      _
    $region3: #{tpu_custom_call.1} parent=1 // pred_check_branch
      %11 = sbr.rel (0) target = $region5
    $region4: #{tpu_custom_call.1} parent=1 // pred_region
      %s13 = ssub.s32 64, 64
      %14 = vsyncadd [#allocation3], %s13
      %s16 = sshll.u32 [#allocation2], 4
      %s17 = int_to_ptr.vmem [resolvable:$true] %s16
      %19 = dma.hbm_to_vmem [thread:$0]  %s0, 64, %s17, [#allocation3]
    $region5: #{tpu_custom_call.1} parent=1 // pred_fallthru
      _
    // Predicated region
    $region6: #{tpu_custom_call.1} parent=1 // pred_check
      _
    $region7: #{tpu_custom_call.1} parent=1 // pred_check_branch
      %21 = sbr.rel (0) target = $region9
    $region8: #{tpu_custom_call.1} parent=1 // pred_region
      %s23 = ssub.s32 32, 32
      %24 = vsyncadd [#allocation6], %s23
      %s26 = sshll.u32 [#allocation5], 4
      %s27 = int_to_ptr.vmem [resolvable:$true] %s26
      %29 = dma.hbm_to_vmem [thread:$0]  %s1, 32, %s27, [#allocation6]
    $region9: #{tpu_custom_call.1} parent=1 // pred_fallthru
      _
    // Predicated region
    $region10: #{tpu_custom_call.1} parent=1 // pred_check
      _
    $region11: #{tpu_custom_call.1} parent=1 // pred_check_branch
      %31 = sbr.rel (0) target = $region13
    $region12: #{tpu_custom_call.1} parent=1 // pred_region
      %32 = dma.done [#allocation3], 64
    $region13: #{tpu_custom_call.1} parent=1 // pred_fallthru
      _
    // Predicated region
    $region14: #{tpu_custom_call.1} parent=1 // pred_check
      _
    $region15: #{tpu_custom_call.1} parent=1 // pred_check_branch
      %34 = sbr.rel (0) target = $region17
    $region16: #{tpu_custom_call.1} parent=1 // pred_region
      %35 = dma.done [#allocation6], 32
    $region17: #{tpu_custom_call.1} parent=1 // pred_fallthru
      _
    %v36 = vld [vmem:[#allocation2] sm:$0xf]
    %v37 = vld [vmem:[#allocation5] sm:$0x3]
    %v39 = vlaneseq
    %v40 = vshrl.u32 %v39, 7
    %v41 = vsub.s32 0, %v40
    %v42 = vrot.slane %v37, %v41
    %v43 = vlaneseq
    %v44 = vshrl.u32 %v43, 7
    %v45 = vsub.s32 1, %v44
    %v46 = vrot.slane %v37, %v45
    %v47 = vcombine.low %v42, %v46
    %v49 = vunpack.c.l.s4 1983009808
    %v50 = vunpack.c.0.s8 %v49
    %v51 = vlaneseq
    %v52 = vshrl.u32 %v51, 7
    %v53 = vsub.s32 %v50, %v52
    %v54 = vrot.slane %v47, %v53
    %v56 = vadd.f32 %v36, %v54
    %57 = vst [vmem:[#allocation7] sm:$0xf] %v56
    // Predicated region
    $region18: #{tpu_custom_call.1} parent=1 // pred_check
      _
    $region19: #{tpu_custom_call.1} parent=1 // pred_check_branch
      %59 = sbr.rel (0) target = $region21
    $region20: #{tpu_custom_call.1} parent=1 // pred_region
      %s61 = ssub.s32 64, 64
      %62 = vsyncadd [#allocation4], %s61
      %s64 = sshll.u32 [#allocation7], 4
      %s65 = int_to_ptr.vmem [resolvable:$true] %s64
      %67 = dma.vmem_to_hbm [thread:$0]  %s65, 64, %s2, [#allocation4]
    $region21: #{tpu_custom_call.1} parent=1 // pred_fallthru
      _
    // Predicated region
    $region22: #{tpu_custom_call.1} parent=1 // pred_check
      _
    $region23: #{tpu_custom_call.1} parent=1 // pred_check_branch
      %69 = sbr.rel (0) target = $region25
    $region24: #{tpu_custom_call.1} parent=1 // pred_region
      %70 = dma.done [#allocation4], 64
    $region25: #{tpu_custom_call.1} parent=1 // pred_fallthru
      _
    %71 = vsyncpa [#allocation3], 1
    %72 = vsyncpa [#allocation6], 1
    %73 = vsyncpa [#allocation4], 1

</llo_original>
